<compile_context>
chip_gen: v7x
topology: tpu7x:2x2x1
jax: 0.10.0
libtpu: 0.0.40
codegen_flags: <defaults>
</compile_context>

<pallas_src>
import jax
import jax.numpy as jnp
from jax.experimental import pallas as pl
from jax.experimental.pallas import tpu as pltpu


def _attention_pool_kernel(x_ref, w_ref, o_ref):
    # x_ref: (TB, n, d) block, w_ref: (d, d), o_ref: (TB, d)
    tb, n, d = x_ref.shape
    x = x_ref[...]                                           # (TB, n, d)

    # One large matmul on the MXU: (TB*n, d) @ (d, d).
    logits = jnp.dot(x.reshape(tb * n, d), w_ref[...],
                     preferred_element_type=jnp.float32)     # (TB*n, d)
    logits = logits.reshape(tb, n, d)

    # Softmax over the sequence axis (torch dim=-2), fused with the weighted
    # sum: sum(x * e / sum(e)) == sum(x * e) / sum(e).
    m = jnp.max(logits, axis=1, keepdims=True)               # (TB, 1, d)
    e = jnp.exp(logits - m)                                   # (TB, n, d)
    den = jnp.sum(e, axis=1)                                  # (TB, d)
    num = jnp.sum(x.astype(jnp.float32) * e, axis=1)          # (TB, d)

    o_ref[...] = (num * pl.reciprocal(den, approx=True)).astype(o_ref.dtype)


def _choose_batch_tile(b: int, n: int, d: int, itemsize: int) -> int:
    """Pick TB: ~2 MiB of x per step (mem-bound op), capped by a VMEM budget
    (x and out are double-buffered by the pipeline, W is tiny).  If TB < b,
    keep it a multiple of 8 so the (TB, d) output block is sublane-aligned."""
    row_bytes = max(1, n * d * itemsize)
    target_block_bytes = 2 * 1024 * 1024
    budget = 24 * 1024 * 1024                     # fits the 32 MiB scoped limit
    per_tb = 2 * row_bytes + 2 * d * itemsize
    w_bytes = 2 * d * d * itemsize
    max_tb = max(1, (budget - w_bytes) // per_tb)
    tb = max(1, min(target_block_bytes // row_bytes, max_tb, b))
    if tb < b:
        tb = max(8, (tb // 8) * 8)
    return int(min(tb, b))


def attention_pool(x: jax.Array, w: jax.Array) -> jax.Array:
    """x: (b, n, d), w: (d, d) -> (b, d). Matches the PyTorch forward."""
    b, n, d = x.shape
    assert w.shape == (d, d)
    itemsize = jnp.dtype(x.dtype).itemsize

    tb = _choose_batch_tile(b, n, d, itemsize)
    num_tiles = pl.cdiv(b, tb)
    b_pad = num_tiles * tb
    if b_pad != b:
        # Zero-padded batch rows produce finite, garbage-free outputs that we
        # simply slice off afterwards.
        x = jnp.pad(x, ((0, b_pad - b), (0, 0), (0, 0)))

    out = pl.pallas_call(
        _attention_pool_kernel,
        out_shape=jax.ShapeDtypeStruct((b_pad, d), x.dtype),
        grid_spec=pltpu.PrefetchScalarGridSpec(
            num_scalar_prefetch=0,
            grid=(num_tiles,),
            in_specs=[
                pl.BlockSpec((tb, n, d), lambda i: (i, 0, 0)),
                # Constant index_map -> fetched once across the grid.
                pl.BlockSpec((d, d), lambda i: (0, 0)),
            ],
            out_specs=pl.BlockSpec((tb, d), lambda i: (i, 0)),
        ),
        compiler_params=pltpu.CompilerParams(
            dimension_semantics=("parallel",),
            vmem_limit_bytes=32 * 1024 * 1024),
    )(x, w)

    return out[:b] if b_pad != b else out


def attention_pool_ref(x: jax.Array, w: jax.Array) -> jax.Array:
    """Pure-JAX reference mirroring the PyTorch forward."""
    logits = jnp.einsum("bnd,de->bne", x, w)
    attn = jax.nn.softmax(logits, axis=-2)
    return jnp.sum(x * attn, axis=-2)


if __name__ == "__main__":
    # Small shapes consistent with the module: batch=2, seq=8, dim=32.
    b, n, d = 2, 8, 32
    key = jax.random.PRNGKey(0)
    x = jax.random.normal(key, (b, n, d), dtype=jnp.float32)

    # Deterministic parameter init, identical to nn.Parameter(torch.eye(dim)).
    w = jnp.eye(d, dtype=jnp.float32)

    out = attention_pool(x, w)
    out = jax.block_until_ready(out)

    ref = attention_pool_ref(x, w)
    assert out.shape == (b, d)
    # Tolerance loosened slightly for the approximate (EUP) reciprocal.
    assert jnp.allclose(out, ref, atol=2e-3, rtol=2e-3)

    print("KERNEL_OK")
</pallas_src>

<mosaic_0001>
module attributes {stable_mosaic.version = 11 : i64} {
  func.func @_attention_pool_kernel(%arg0: i32, %arg1: memref<2x8x32xf32, #tpu.memory_space<vmem>>, %arg2: memref<32x32xf32, #tpu.memory_space<vmem>>, %arg3: memref<2x32xf32, #tpu.memory_space<vmem>>) attributes {dimension_semantics = [#tpu.dimension_semantics<parallel>], iteration_bounds = array<i64: 1>, scalar_prefetch = 0 : i64, scratch_operands = 0 : i64, tpu.core_type = #tpu.core_type<tc>, window_params = [{transform_indices = @transform_0, window_bounds = array<i64: 2, 8, 32>}, {pipeline_mode = #tpu.pipeline_mode<synchronous>, transform_indices = @transform_1, window_bounds = array<i64: 32, 32>}, {transform_indices = @transform_2, window_bounds = array<i64: 2, 32>}]} {
    %c0 = arith.constant 0 : index
    %c0_0 = arith.constant 0 : index
    %c0_1 = arith.constant 0 : index
    %0 = vector.load %arg1[%c0, %c0_0, %c0_1] : memref<2x8x32xf32, #tpu.memory_space<vmem>>, vector<2x8x32xf32>
    %1 = vector.shape_cast %0 : vector<2x8x32xf32> to vector<16x32xf32>
    %c0_2 = arith.constant 0 : index
    %c0_3 = arith.constant 0 : index
    %2 = vector.load %arg2[%c0_2, %c0_3] : memref<32x32xf32, #tpu.memory_space<vmem>>, vector<32x32xf32>
    %cst = arith.constant dense<0.000000e+00> : vector<16x32xf32>
    %3 = tpu.matmul %1, %2, %cst {dimension_numbers = #tpu.dot_dimension_numbers<[1], [0], [0], [1], [0, 0, 1, 1], [], []>} : vector<16x32xf32>, vector<32x32xf32>, vector<16x32xf32> -> vector<16x32xf32>
    %4 = vector.shape_cast %3 : vector<16x32xf32> to vector<2x8x32xf32>
    %cst_4 = arith.constant dense<0xFF800000> : vector<2x32xf32>
    %5 = vector.multi_reduction <maximumf>, %4, %cst_4 [1] : vector<2x8x32xf32> to vector<2x32xf32>
    %6 = vector.shape_cast %5 : vector<2x32xf32> to vector<2x1x32xf32>
    %7 = vector.broadcast %6 : vector<2x1x32xf32> to vector<2x8x32xf32>
    %8 = arith.subf %4, %7 : vector<2x8x32xf32>
    %9 = math.exp %8 : vector<2x8x32xf32>
    %cst_5 = arith.constant dense<0.000000e+00> : vector<2x32xf32>
    %10 = vector.multi_reduction <add>, %9, %cst_5 [1] : vector<2x8x32xf32> to vector<2x32xf32>
    %11 = arith.mulf %0, %9 : vector<2x8x32xf32>
    %cst_6 = arith.constant dense<0.000000e+00> : vector<2x32xf32>
    %12 = vector.multi_reduction <add>, %11, %cst_6 [1] : vector<2x8x32xf32> to vector<2x32xf32>
    %13 = tpu.reciprocal %10 {approx = true} : vector<2x32xf32> -> vector<2x32xf32>
    %14 = arith.mulf %12, %13 : vector<2x32xf32>
    %c0_7 = arith.constant 0 : index
    %c0_8 = arith.constant 0 : index
    %15 = vector.load %arg3[%c0_7, %c0_8] : memref<2x32xf32, #tpu.memory_space<vmem>>, vector<2x32xf32>
    tpu.vector_store %arg3[%c0_7, %c0_8], %14 {strides = array<i32>} : memref<2x32xf32, #tpu.memory_space<vmem>>, vector<2x32xf32>,
    return
  }
  func.func @transform_0(%arg0: i32) -> (i32, i32, i32) {
    %c0_i32 = arith.constant 0 : i32
    %c0_i32_0 = arith.constant 0 : i32
    %c0_i32_1 = arith.constant 0 : i32
    return %arg0, %c0_i32, %c0_i32_0 : i32, i32, i32
  }
  func.func @transform_1(%arg0: i32) -> (i32, i32) {
    %c0_i32 = arith.constant 0 : i32
    %c0_i32_0 = arith.constant 0 : i32
    %c0_i32_1 = arith.constant 0 : i32
    return %c0_i32, %c0_i32_0 : i32, i32
  }
  func.func @transform_2(%arg0: i32) -> (i32, i32) {
    %c0_i32 = arith.constant 0 : i32
    %c0_i32_0 = arith.constant 0 : i32
    return %arg0, %c0_i32 : i32, i32
  }
}

</mosaic_0001>

<llo_original>
// kernel: tpu_custom_call.1
$region0: #{tpu_custom_call.1}
  #allocation0 [shape = 'u32[]', space=smem, size = 0x4, offset = 0x4, fixed_abs, tag = 'smem constant byte address 0x4 - core index']
  #allocation1 [shape = 'u32[144,128]{1,0:T(1,128)}', space=vmem, size = 0x12000, scoped, tag = 'internal scratch']
  %s0 = inlined_call_operand.hbm [shape: f32[2,8,32], index: 0, kind: input, shape index: {}]
  %s1 = inlined_call_operand.hbm [shape: f32[32,32], index: 1, kind: input, shape index: {}]
  %s2 = inlined_call_operand.hbm [shape: f32[2,32], index: 2, kind: output, shape index: {}]
  %s3 = sld [smem:[#allocation0]]
  $region26: #{tpu_custom_call.1} parent=0
    _
  %s5 = ssub.s32 1, %s3
  %s6 = scalar_select 0, %s5, %s3
  $region1: #{tpu_custom_call.1} parent=0
    #allocation2 [shape = 'u8[8192]{0}', space=vmem, size = 0x2000, scoped, tag = 'input window, operand 0, single buffered']
    #allocation3 [shape = 's32[1]{0}', space=sflag, size = 0x4, scoped, tag = 'scoped memory for tpu_custom_call.1']
    #allocation4 [shape = 's32[1]{0}', space=sflag, size = 0x4, scoped, tag = 'scoped memory for tpu_custom_call.1']
    #allocation5 [shape = 'u8[16384]{0}', space=vmem, size = 0x4000, scoped, tag = 'input window, operand 1, single buffered']
    #allocation6 [shape = 's32[1]{0}', space=sflag, size = 0x4, scoped, tag = 'scoped memory for tpu_custom_call.1']
    #allocation7 [shape = 'u8[1024]{0}', space=vmem, size = 0x400, scoped, tag = 'output window, operand 0, single buffered']
    %7 = vsyncpa [#allocation3], 0
    %8 = vsyncpa [#allocation6], 0
    %9 = vsyncpa [#allocation4], 0
    // Predicated region
    $region2: #{tpu_custom_call.1} parent=1 // pred_check
      _
    $region3: #{tpu_custom_call.1} parent=1 // pred_check_branch
      %11 = sbr.rel (0) target = $region5
    $region4: #{tpu_custom_call.1} parent=1 // pred_region
      %s13 = ssub.s32 256, 256
      %14 = vsyncadd [#allocation3], %s13
      %s15 = sshll.u32 [#allocation2], 4
      %s16 = int_to_ptr.vmem [resolvable:$true] %s15
      %21 = dma.hbm_to_vmem [thread:$0]  %s0, 256, %s16, [#allocation3], 128, 128, 8
    $region5: #{tpu_custom_call.1} parent=1 // pred_fallthru
      _
    // Predicated region
    $region6: #{tpu_custom_call.1} parent=1 // pred_check
      _
    $region7: #{tpu_custom_call.1} parent=1 // pred_check_branch
      %23 = sbr.rel (0) target = $region9
    $region8: #{tpu_custom_call.1} parent=1 // pred_region
      %s25 = ssub.s32 512, 512
      %26 = vsyncadd [#allocation6], %s25
      %s27 = sshll.u32 [#allocation5], 4
      %s28 = int_to_ptr.vmem [resolvable:$true] %s27
      %33 = dma.hbm_to_vmem [thread:$0]  %s1, 512, %s28, [#allocation6], 128, 128, 8
    $region9: #{tpu_custom_call.1} parent=1 // pred_fallthru
      _
    // Predicated region
    $region10: #{tpu_custom_call.1} parent=1 // pred_check
      _
    $region11: #{tpu_custom_call.1} parent=1 // pred_check_branch
      %35 = sbr.rel (0) target = $region13
    $region12: #{tpu_custom_call.1} parent=1 // pred_region
      %36 = dma.done [#allocation3], 256
    $region13: #{tpu_custom_call.1} parent=1 // pred_fallthru
      _
    // Predicated region
    $region14: #{tpu_custom_call.1} parent=1 // pred_check
      _
    $region15: #{tpu_custom_call.1} parent=1 // pred_check_branch
      %38 = sbr.rel (0) target = $region17
    $region16: #{tpu_custom_call.1} parent=1 // pred_region
      %39 = dma.done [#allocation6], 512
    $region17: #{tpu_custom_call.1} parent=1 // pred_fallthru
      _
    %v40 = vld [vmem:[#allocation2] sm:$0xff]
    %v41 = vld [vmem:[#allocation2 + $0x8] sm:$0xff]
    %v42 = vld [vmem:[#allocation5] sm:$0xff]
    %v43 = vld [vmem:[#allocation5 + $0x8] sm:$0xff]
    %v44 = vld [vmem:[#allocation5 + $0x10] sm:$0xff]
    %v45 = vld [vmem:[#allocation5 + $0x18] sm:$0xff]
    %vm46 = vcmask 261120
    %v48 = vsel %vm46, %v40, 0
    %v51 = vsel %vm46, %v41, 0
    %53 = vmatprep.subr.mxu0 0.0
    %54 = vmatpush1.msra.mxu0 %v42
    %55 = vmatprep.subr.mxu0 0.0
    %56 = vmatpush1.msra.mxu0 %v43
    %57 = vmatprep.subr.mxu0 0.0
    %58 = vmatpush1.msra.mxu0 %v44
    %59 = vmatprep.subr.mxu0 0.0
    %60 = vmatpush1.msra.mxu0 %v45
    %61 = vmatprep.subr.mxu0 0.0
    %62 = vmatpush1.msra.mxu0 0.0
    %63 = vmatprep.subr.mxu0 0.0
    %64 = vmatpush1.msra.mxu0 0.0
    %65 = vmatprep.subr.mxu0 0.0
    %66 = vmatpush1.msra.mxu0 0.0
    %67 = vmatprep.subr.mxu0 0.0
    %68 = vmatpush1.msra.mxu0 0.0
    %69 = vmatprep.subr.mxu0 0.0
    %70 = vmatpush1.msra.mxu0 0.0
    %71 = vmatprep.subr.mxu0 0.0
    %72 = vmatpush1.msra.mxu0 0.0
    %73 = vmatprep.subr.mxu0 0.0
    %74 = vmatpush1.msra.mxu0 0.0
    %75 = vmatprep.subr.mxu0 0.0
    %76 = vmatpush1.msra.mxu0 0.0
    %77 = vmatprep.subr.mxu0 0.0
    %78 = vmatpush1.msra.mxu0 0.0
    %79 = vmatprep.subr.mxu0 0.0
    %80 = vmatpush1.msra.mxu0 0.0
    %81 = vmatprep.subr.mxu0 0.0
    %82 = vmatpush1.msra.mxu0 0.0
    %83 = vmatprep.subr.mxu0 0.0
    %84 = vmatpush1.msra.mxu0 0.0
    %85 = vmatprep.subr.mxu0 0.0
    %86 = vmatpush1.msra.mxu0 0.0
    %87 = vmatprep.subr.mxu0 0.0
    %88 = vmatpush1.msra.mxu0 0.0
    %89 = vmatprep.subr.mxu0 0.0
    %90 = vmatpush1.msra.mxu0 0.0
    %91 = vmatprep.subr.mxu0 0.0
    %92 = vmatpush1.msra.mxu0 0.0
    %93 = vmatprep.subr.mxu0 0.0
    %94 = vmatpush1.msra.mxu0 0.0
    %95 = vmatprep.subr.mxu0 0.0
    %96 = vmatpush1.msra.mxu0 0.0
    %97 = vmatprep.subr.mxu0 0.0
    %98 = vmatpush1.msra.mxu0 0.0
    %99 = vmatprep.subr.mxu0 0.0
    %100 = vmatpush1.msra.mxu0 0.0
    %101 = vmatprep.subr.mxu0 0.0
    %102 = vmatpush1.msra.mxu0 0.0
    %103 = vmatprep.subr.mxu0 0.0
    %104 = vmatpush1.msra.mxu0 0.0
    %105 = vmatprep.subr.mxu0 0.0
    %106 = vmatpush1.msra.mxu0 0.0
    %107 = vmatprep.subr.mxu0 0.0
    %108 = vmatpush1.msra.mxu0 0.0
    %109 = vmatprep.subr.mxu0 0.0
    %110 = vmatpush1.msra.mxu0 0.0
    %111 = vmatprep.subr.mxu0 0.0
    %112 = vmatpush1.msra.mxu0 0.0
    %113 = vmatprep.subr.mxu0 0.0
    %114 = vmatpush1.msra.mxu0 0.0
    %115 = vmatprep.subr.mxu0 0.0
    %116 = vmatpush1.msra.mxu0 0.0
    %117 = vmatprep.mubr.f32.mxu0 0.0
    %118 = vmatmul.mubr.f32.gmra.mrb[0].mxu0 %v48
    %v119 = vpop.f32.mrb[0].mxu0
    %v120 = vadd.f32 0.0, %v119
    %v121 = vpop.f32.mrb[0].mxu0
    %122 = vmatprep.mubr.f32.mxu0 0.0
    %123 = vmatmul.mubr.f32.gmra.mrb[0].mxu0 %v51
    %v124 = vpop.f32.mrb[0].mxu0
    %v125 = vadd.f32 0.0, %v124
    %v126 = vpop.f32.mrb[0].mxu0
    %127 = vdwg.mxu0
    %v128 = vsel %vm46, %v120, -inf
    %v129 = vrot.slane %v128, 4
    %v130 = vmax.f32 %v128, %v129
    %v131 = vrot.slane %v130, 2
    %v132 = vmax.f32 %v130, %v131
    %v133 = vrot.slane %v132, 1
    %v134 = vmax.f32 %v132, %v133
    %v135 = vsel %vm46, %v125, -inf
    %v136 = vrot.slane %v135, 4
    %v137 = vmax.f32 %v135, %v136
    %v138 = vrot.slane %v137, 2
    %v139 = vmax.f32 %v137, %v138
    %v140 = vrot.slane %v139, 1
    %v141 = vmax.f32 %v139, %v140
    %v142 = vsub.f32 %v120, %v134
    %v143 = vsub.f32 %v125, %v141
    %v144 = vmul.f32 %v142, 1.442695
    %v145 = vpow.pop %v144
    %v146 = vmul.f32 %v143, 1.442695
    %v147 = vpow.pop %v146
    %v148 = vsel %vm46, %v145, 0.0
    %v149 = vrot.slane %v148, 4
    %v150 = vadd.f32 %v148, %v149
    %v151 = vrot.slane %v150, 2
    %v152 = vadd.f32 %v150, %v151
    %v153 = vrot.slane %v152, 1
    %v154 = vadd.f32 %v152, %v153
    %v155 = vsel %vm46, %v147, 0.0
    %v156 = vrot.slane %v155, 4
    %v157 = vadd.f32 %v155, %v156
    %v158 = vrot.slane %v157, 2
    %v159 = vadd.f32 %v157, %v158
    %v160 = vrot.slane %v159, 1
    %v161 = vadd.f32 %v159, %v160
    %v162 = vmul.f32 %v40, %v145
    %v163 = vmul.f32 %v41, %v147
    %v164 = vsel %vm46, %v162, 0.0
    %v165 = vrot.slane %v164, 4
    %v166 = vadd.f32 %v164, %v165
    %v167 = vrot.slane %v166, 2
    %v168 = vadd.f32 %v166, %v167
    %v169 = vrot.slane %v168, 1
    %v170 = vadd.f32 %v168, %v169
    %v171 = vsel %vm46, %v163, 0.0
    %v172 = vrot.slane %v171, 4
    %v173 = vadd.f32 %v171, %v172
    %v174 = vrot.slane %v173, 2
    %v175 = vadd.f32 %v173, %v174
    %v176 = vrot.slane %v175, 1
    %v177 = vadd.f32 %v175, %v176
    %v178 = vrcp.pop %v154
    %v179 = vrcp.pop %v161
    %v180 = vmul.f32 %v170, %v178
    %v181 = vmul.f32 %v177, %v179
    %vm184 = vcmask 1041409
    %v185 = vsel %vm184, %v181, %v180
    %vm187 = vcmask 254976
    %188 = vst.msk [vmem:[#allocation7] sm:$0x3] %vm187, %v185
    // Predicated region
    $region18: #{tpu_custom_call.1} parent=1 // pred_check
      _
    $region19: #{tpu_custom_call.1} parent=1 // pred_check_branch
      %190 = sbr.rel (0) target = $region21
    $region20: #{tpu_custom_call.1} parent=1 // pred_region
      %s192 = ssub.s32 32, 32
      %193 = vsyncadd [#allocation4], %s192
      %s195 = sshll.u32 [#allocation7], 4
      %s196 = int_to_ptr.vmem [resolvable:$true] %s195
      %198 = dma.vmem_to_hbm [thread:$0]  %s196, 32, %s2, [#allocation4]
    $region21: #{tpu_custom_call.1} parent=1 // pred_fallthru
      _
    // Predicated region
    $region22: #{tpu_custom_call.1} parent=1 // pred_check
      _
    $region23: #{tpu_custom_call.1} parent=1 // pred_check_branch
      %200 = sbr.rel (0) target = $region25
    $region24: #{tpu_custom_call.1} parent=1 // pred_region
      %201 = dma.done [#allocation4], 32
    $region25: #{tpu_custom_call.1} parent=1 // pred_fallthru
      _
    %202 = vsyncpa [#allocation3], 1
    %203 = vsyncpa [#allocation6], 1
    %204 = vsyncpa [#allocation4], 1

</llo_original>
